<compile_context>
chip_gen: v6e
topology: v6e:2x2x1
jax: 0.10.0
libtpu: 0.0.40
codegen_flags: <defaults>
</compile_context>

<pallas_src>
import functools

import jax
import jax.numpy as jnp
from jax.experimental import pallas as pl
from jax.experimental.pallas import tpu as pltpu


def _round_up(x, m):
    return ((x + m - 1) // m) * m


def _vmem_limit_bytes():
    # Raise the scoped-VMEM limit above the conservative defaults (16 MiB v5e /
    # 32 MiB v6e+), leaving headroom below physical capacity.
    try:
        cap = pltpu.get_tpu_info().vmem_capacity_bytes
    except Exception:
        cap = 64 * 1024 * 1024
    return int(min(cap * 3 // 4, 100 * 1024 * 1024))


# -----------------------------------------------------------------------------
# Fused kernel: ReLU + conv (single stacked-K matmul) + per-image, per-channel
# masked sum / sum-of-squares for BatchNorm batch statistics.
#
# Block shapes per grid step (one image per step, grid = (N,), all "parallel"):
#   x_ref     : (1, C_in, Lin)          bf16  flattened padded image (+ tail pad)
#   w_ref     : (C_out, C_in*kh*kw)     bf16  stacked-K weight slab
#   mask_ref  : (1, Epad)               f32   1.0 on valid extended pixels
#   y_ref     : (1, C_out, Epad)        bf16  lane-dense conv output (pre-BN)
#   stats_ref : (1, C_out, 2)           f32   [:, :, 0]=sum(y), [:, :, 1]=sum(y^2)
# -----------------------------------------------------------------------------
def relu_conv_stats_kernel(x_ref, w_ref, mask_ref, y_ref, stats_ref,
                           *, kh, kw, Wp, Epad):
    # ReLU hoisted: once per grid step on the whole flattened padded image
    # (exact: ReLU commutes with the bf16 cast done in the wrapper; the padding
    # zeros stay zero).
    x_relu = jnp.maximum(x_ref[0], 0)                       # [C_in, Lin] bf16

    # Build the stacked-K operand once: kh*kw shifted [C_in, Epad] views,
    # sublane-concatenated so the whole conv is ONE MXU matmul, K = C_in*kh*kw.
    taps = []
    for di in range(kh):
        for dj in range(kw):
            off = di * Wp + dj
            taps.append(x_relu[:, off:off + Epad])          # [C_in, Epad]
    xk = jnp.concatenate(taps, axis=0)                      # [C_in*kh*kw, Epad]

    acc = jnp.dot(w_ref[...], xk,
                  preferred_element_type=jnp.float32)       # [C_out, Epad] f32

    # Lane-dense bf16 store of the conv result (before the BN affine).
    y_ref[0] = acc.astype(y_ref.dtype)

    # Per-image BN partial statistics (masked so width-padding / off-stride /
    # tail columns never pollute them).  No cross-step accumulator -> the grid
    # can be fully "parallel" (v7x megacore shards the batch for any N).
    m = mask_ref[...]                                       # [1, Epad] 0/1
    ym = acc * m
    stats_ref[0, :, 0:1] = jnp.sum(ym, axis=1, keepdims=True)         # sum(y)
    stats_ref[0, :, 1:2] = jnp.sum(ym * acc, axis=1, keepdims=True)   # sum(y^2)


@functools.partial(jax.jit, static_argnames=("kernel_size", "stride", "padding",
                                             "affine", "eps"))
def relu_conv_bn(x, weight, gamma, beta, *, kernel_size, stride, padding,
                 affine=True, eps=1e-5):
    """ReLU -> Conv2d(C_in, C_out, k, stride, padding, bias=False) -> BatchNorm2d.

    x:      [N, C_in, H, W]         (NCHW, float32)
    weight: [C_out, C_in, kh, kw]   (PyTorch conv weight layout)
    gamma, beta: [C_out]            (BN affine params; ignored if affine=False)
    Returns [N, C_out, Ho, Wo] float32.
    """
    N, C_in, H, W = x.shape
    C_out = weight.shape[0]
    kh = kw = kernel_size
    s = stride

    Hp, Wp = H + 2 * padding, W + 2 * padding
    Ho = (Hp - kh) // s + 1
    Wo = (Wp - kw) // s + 1
    Ho1 = Hp - kh + 1                      # stride-1 "extended" output rows
    E = Ho1 * Wp                           # extended output pixels per image
    Epad = _round_up(E, 128)               # lane-dense tile width

    # ---- flattened, padded, bf16 activation ---------------------------------
    xp = jnp.pad(x, ((0, 0), (0, 0), (padding, padding), (padding, padding)))
    Lin = _round_up(Epad + (kh - 1) * Wp + (kw - 1), 128)
    xflat = jnp.pad(xp.reshape(N, C_in, Hp * Wp),
                    ((0, 0), (0, 0), (0, Lin - Hp * Wp))).astype(jnp.bfloat16)

    # Stacked-K weight: w2[o, (di*kw + dj)*C_in + c] = weight[o, c, di, dj].
    Kdim = kh * kw * C_in
    w2 = jnp.transpose(weight, (2, 3, 1, 0)).reshape(Kdim, C_out).T
    w2 = w2.astype(jnp.bfloat16)           # [C_out, Kdim]

    # Validity mask over the extended pixel index (excludes width-padding
    # columns, off-stride phases and the tail pad) -> used only for the stats.
    e = jnp.arange(Epad, dtype=jnp.int32)
    ho1 = e // Wp
    wo1 = e % Wp
    valid = ((e < E) & (ho1 % s == 0) & (wo1 % s == 0)
             & (ho1 // s < Ho) & (wo1 // s < Wo))
    mask = valid.astype(jnp.float32).reshape(1, Epad)

    kern = functools.partial(relu_conv_stats_kernel,
                             kh=kh, kw=kw, Wp=Wp, Epad=Epad)

    y_ext, stats = pl.pallas_call(
        kern,
        out_shape=(
            jax.ShapeDtypeStruct((N, C_out, Epad), jnp.bfloat16),
            jax.ShapeDtypeStruct((N, C_out, 2), jnp.float32),
        ),
        grid_spec=pltpu.PrefetchScalarGridSpec(
            num_scalar_prefetch=0,
            grid=(N,),
            in_specs=[
                pl.BlockSpec((1, C_in, Lin), lambda n: (n, 0, 0)),
                pl.BlockSpec((C_out, Kdim), lambda n: (0, 0)),
                pl.BlockSpec((1, Epad), lambda n: (0, 0)),
            ],
            out_specs=[
                pl.BlockSpec((1, C_out, Epad), lambda n: (n, 0, 0)),
                pl.BlockSpec((1, C_out, 2), lambda n: (n, 0, 0)),
            ],
        ),
        compiler_params=pltpu.CompilerParams(
            dimension_semantics=("parallel",),
            vmem_limit_bytes=_vmem_limit_bytes()),
    )(xflat, w2, mask)

    # ---- BN batch statistics (training mode: biased variance over N,H,W) ----
    M_true = N * Ho * Wo
    ch_sum = jnp.sum(stats[:, :, 0], axis=0)          # [C_out]
    ch_ssq = jnp.sum(stats[:, :, 1], axis=0)          # [C_out]
    mean = ch_sum / M_true
    var = jnp.maximum(ch_ssq / M_true - mean * mean, 0.0)   # clamp cancellation
    if affine:
        g = gamma.astype(jnp.float32)
        b = beta.astype(jnp.float32)
    else:
        g = jnp.ones((C_out,), jnp.float32)
        b = jnp.zeros((C_out,), jnp.float32)
    scale = g * jax.lax.rsqrt(var + eps)
    shift = b - mean * scale

    # ---- unpack (no minor-dim transpose) + fused affine in XLA --------------
    y4 = y_ext[:, :, :E].reshape(N, C_out, Ho1, Wp)
    y4 = y4[:, :, ::s, ::s][:, :, :Ho, :Wo]                  # already NCHW, bf16
    out = y4 * scale.reshape(1, C_out, 1, 1) + shift.reshape(1, C_out, 1, 1)
    return out.astype(jnp.float32)


def _reference(x, weight, gamma, beta, *, stride, padding, eps=1e-5):
    """Pure-JAX (f32) reference for validation."""
    xr = jnp.maximum(x, 0.0)
    y = jax.lax.conv_general_dilated(
        xr, weight, window_strides=(stride, stride),
        padding=[(padding, padding), (padding, padding)],
        dimension_numbers=("NCHW", "OIHW", "NCHW"),
        preferred_element_type=jnp.float32)
    mean = jnp.mean(y, axis=(0, 2, 3), keepdims=True)
    var = jnp.mean((y - mean) ** 2, axis=(0, 2, 3), keepdims=True)
    yh = (y - mean) * jax.lax.rsqrt(var + eps)
    return yh * gamma.reshape(1, -1, 1, 1) + beta.reshape(1, -1, 1, 1)


if __name__ == "__main__":
    # Module config: ReLUConvBN(C_in=4, C_out=8, kernel_size=3, stride=1, padding=1)
    N, C_in, H, W = 2, 4, 16, 16
    C_out, ksz, stride, padding = 8, 3, 1, 1

    key = jax.random.PRNGKey(0)
    kx, kw_ = jax.random.split(key)
    x = jax.random.normal(kx, (N, C_in, H, W), dtype=jnp.float32)
    fan_in = C_in * ksz * ksz
    weight = jax.random.normal(kw_, (C_out, C_in, ksz, ksz),
                               dtype=jnp.float32) / jnp.sqrt(fan_in)
    gamma = jnp.ones((C_out,), jnp.float32)
    beta = jnp.zeros((C_out,), jnp.float32)

    out = relu_conv_bn(x, weight, gamma, beta,
                       kernel_size=ksz, stride=stride, padding=padding,
                       affine=True)
    out = jax.block_until_ready(out)

    ref = _reference(x, weight, gamma, beta, stride=stride, padding=padding)
    assert out.shape == (N, C_out, H, W), out.shape
    max_err = float(jnp.max(jnp.abs(out - ref)))
    # Tolerance accounts for the intentional bf16 MXU inputs AND the bf16
    # conv-output writeback (precision contract of the fused kernel).
    assert jnp.allclose(out, ref, atol=3e-2, rtol=3e-2), \
        f"mismatch vs reference, max abs err {max_err}"

    print("KERNEL_OK")
</pallas_src>

<mosaic_0001>
module attributes {stable_mosaic.version = 11 : i64} {
  func.func @relu_conv_stats_kernel(%arg0: i32, %arg1: memref<1x4x512xbf16, #tpu.memory_space<vmem>>, %arg2: memref<8x36xbf16, #tpu.memory_space<vmem>>, %arg3: memref<1x384xf32, #tpu.memory_space<vmem>>, %arg4: memref<1x8x384xbf16, #tpu.memory_space<vmem>>, %arg5: memref<1x8x2xf32, #tpu.memory_space<vmem>>) attributes {dimension_semantics = [#tpu.dimension_semantics<parallel>], iteration_bounds = array<i64: 2>, scalar_prefetch = 0 : i64, scratch_operands = 0 : i64, tpu.core_type = #tpu.core_type<tc>, window_params = [{transform_indices = @transform_0, window_bounds = array<i64: 1, 4, 512>}, {pipeline_mode = #tpu.pipeline_mode<synchronous>, transform_indices = @transform_1, window_bounds = array<i64: 8, 36>}, {pipeline_mode = #tpu.pipeline_mode<synchronous>, transform_indices = @transform_2, window_bounds = array<i64: 1, 384>}, {transform_indices = @transform_3, window_bounds = array<i64: 1, 8, 384>}, {transform_indices = @transform_4, window_bounds = array<i64: 1, 8, 2>}]} {
    %c0 = arith.constant 0 : index
    %c0_0 = arith.constant 0 : index
    %c0_1 = arith.constant 0 : index
    %0 = vector.load %arg1[%c0, %c0_0, %c0_1] : memref<1x4x512xbf16, #tpu.memory_space<vmem>>, vector<1x4x512xbf16>
    %1 = vector.shape_cast %0 : vector<1x4x512xbf16> to vector<4x512xbf16>
    %cst = arith.constant 0.000000e+00 : bf16
    %2 = vector.broadcast %cst : bf16 to vector<4x512xbf16>
    %3 = arith.maximumf %1, %2 : vector<4x512xbf16>
    %4 = vector.extract_strided_slice %3 {offsets = [0, 0], sizes = [4, 384], strides = [1, 1]} : vector<4x512xbf16> to vector<4x384xbf16>
    %5 = vector.extract_strided_slice %3 {offsets = [0, 1], sizes = [4, 384], strides = [1, 1]} : vector<4x512xbf16> to vector<4x384xbf16>
    %6 = vector.extract_strided_slice %3 {offsets = [0, 2], sizes = [4, 384], strides = [1, 1]} : vector<4x512xbf16> to vector<4x384xbf16>
    %7 = vector.extract_strided_slice %3 {offsets = [0, 18], sizes = [4, 384], strides = [1, 1]} : vector<4x512xbf16> to vector<4x384xbf16>
    %8 = vector.extract_strided_slice %3 {offsets = [0, 19], sizes = [4, 384], strides = [1, 1]} : vector<4x512xbf16> to vector<4x384xbf16>
    %9 = vector.extract_strided_slice %3 {offsets = [0, 20], sizes = [4, 384], strides = [1, 1]} : vector<4x512xbf16> to vector<4x384xbf16>
    %10 = vector.extract_strided_slice %3 {offsets = [0, 36], sizes = [4, 384], strides = [1, 1]} : vector<4x512xbf16> to vector<4x384xbf16>
    %11 = vector.extract_strided_slice %3 {offsets = [0, 37], sizes = [4, 384], strides = [1, 1]} : vector<4x512xbf16> to vector<4x384xbf16>
    %12 = vector.extract_strided_slice %3 {offsets = [0, 38], sizes = [4, 384], strides = [1, 1]} : vector<4x512xbf16> to vector<4x384xbf16>
    %13 = tpu.concatenate %4, %5, %6, %7, %8, %9, %10, %11, %12 in 0 : vector<4x384xbf16>, vector<4x384xbf16>, vector<4x384xbf16>, vector<4x384xbf16>, vector<4x384xbf16>, vector<4x384xbf16>, vector<4x384xbf16>, vector<4x384xbf16>, vector<4x384xbf16> -> vector<36x384xbf16>
    %c0_2 = arith.constant 0 : index
    %c0_3 = arith.constant 0 : index
    %14 = vector.load %arg2[%c0_2, %c0_3] : memref<8x36xbf16, #tpu.memory_space<vmem>>, vector<8x36xbf16>
    %cst_4 = arith.constant dense<0.000000e+00> : vector<8x384xf32>
    %15 = tpu.matmul %14, %13, %cst_4 {dimension_numbers = #tpu.dot_dimension_numbers<[1], [0], [0], [1], [0, 0, 1, 1], [], []>} : vector<8x36xbf16>, vector<36x384xbf16>, vector<8x384xf32> -> vector<8x384xf32>
    %16 = arith.truncf %15 : vector<8x384xf32> to vector<8x384xbf16>
    %c0_5 = arith.constant 0 : index
    %c0_6 = arith.constant 0 : index
    %c0_7 = arith.constant 0 : index
    %17 = vector.load %arg4[%c0_5, %c0_6, %c0_7] : memref<1x8x384xbf16, #tpu.memory_space<vmem>>, vector<1x8x384xbf16>
    %18 = vector.shape_cast %17 : vector<1x8x384xbf16> to vector<8x384xbf16>
    %19 = vector.shape_cast %16 : vector<8x384xbf16> to vector<1x8x384xbf16>
    tpu.vector_store %arg4[%c0_5, %c0_6, %c0_7], %19 {strides = array<i32>} : memref<1x8x384xbf16, #tpu.memory_space<vmem>>, vector<1x8x384xbf16>,
    %c0_8 = arith.constant 0 : index
    %c0_9 = arith.constant 0 : index
    %20 = vector.load %arg3[%c0_8, %c0_9] : memref<1x384xf32, #tpu.memory_space<vmem>>, vector<1x384xf32>
    %21 = vector.broadcast %20 : vector<1x384xf32> to vector<8x384xf32>
    %22 = arith.mulf %15, %21 : vector<8x384xf32>
    %cst_10 = arith.constant dense<0.000000e+00> : vector<8xf32>
    %23 = vector.multi_reduction <add>, %22, %cst_10 [1] : vector<8x384xf32> to vector<8xf32>
    %24 = vector.shape_cast %23 : vector<8xf32> to vector<8x1xf32>
    %c0_11 = arith.constant 0 : index
    %c0_12 = arith.constant 0 : index
    %c0_13 = arith.constant 0 : index
    %25 = vector.load %arg5[%c0_11, %c0_12, %c0_13] : memref<1x8x2xf32, #tpu.memory_space<vmem>>, vector<1x8x1xf32>
    %26 = vector.shape_cast %25 : vector<1x8x1xf32> to vector<8x1xf32>
    %27 = vector.shape_cast %24 : vector<8x1xf32> to vector<1x8x1xf32>
    tpu.vector_store %arg5[%c0_11, %c0_12, %c0_13], %27 {strides = array<i32>} : memref<1x8x2xf32, #tpu.memory_space<vmem>>, vector<1x8x1xf32>,
    %28 = arith.mulf %22, %15 : vector<8x384xf32>
    %cst_14 = arith.constant dense<0.000000e+00> : vector<8xf32>
    %29 = vector.multi_reduction <add>, %28, %cst_14 [1] : vector<8x384xf32> to vector<8xf32>
    %30 = vector.shape_cast %29 : vector<8xf32> to vector<8x1xf32>
    %c0_15 = arith.constant 0 : index
    %c0_16 = arith.constant 0 : index
    %c1 = arith.constant 1 : index
    %31 = vector.load %arg5[%c0_15, %c0_16, %c1] : memref<1x8x2xf32, #tpu.memory_space<vmem>>, vector<1x8x1xf32>
    %32 = vector.shape_cast %31 : vector<1x8x1xf32> to vector<8x1xf32>
    %33 = vector.shape_cast %30 : vector<8x1xf32> to vector<1x8x1xf32>
    tpu.vector_store %arg5[%c0_15, %c0_16, %c1], %33 {strides = array<i32>} : memref<1x8x2xf32, #tpu.memory_space<vmem>>, vector<1x8x1xf32>,
    return
  }
  func.func @transform_0(%arg0: i32) -> (i32, i32, i32) {
    %c0_i32 = arith.constant 0 : i32
    %c0_i32_0 = arith.constant 0 : i32
    %c0_i32_1 = arith.constant 0 : i32
    return %arg0, %c0_i32, %c0_i32_0 : i32, i32, i32
  }
  func.func @transform_1(%arg0: i32) -> (i32, i32) {
    %c0_i32 = arith.constant 0 : i32
    %c0_i32_0 = arith.constant 0 : i32
    %c0_i32_1 = arith.constant 0 : i32
    return %c0_i32, %c0_i32_0 : i32, i32
  }
  func.func @transform_2(%arg0: i32) -> (i32, i32) {
    %c0_i32 = arith.constant 0 : i32
    %c0_i32_0 = arith.constant 0 : i32
    %c0_i32_1 = arith.constant 0 : i32
    return %c0_i32, %c0_i32_0 : i32, i32
  }
  func.func @transform_3(%arg0: i32) -> (i32, i32, i32) {
    %c0_i32 = arith.constant 0 : i32
    %c0_i32_0 = arith.constant 0 : i32
    %c0_i32_1 = arith.constant 0 : i32
    return %arg0, %c0_i32, %c0_i32_0 : i32, i32, i32
  }
  func.func @transform_4(%arg0: i32) -> (i32, i32, i32) {
    %c0_i32 = arith.constant 0 : i32
    %c0_i32_0 = arith.constant 0 : i32
    %c0_i32_1 = arith.constant 0 : i32
    return %arg0, %c0_i32, %c0_i32_0 : i32, i32, i32
  }
}

</mosaic_0001>

<llo_original>
// kernel: relu_conv_bn.1
$region0: #{relu_conv_bn.1}
  #allocation0 [shape = 'u32[]', space=smem, size = 0x4, offset = 0x4, fixed_abs, tag = 'smem constant byte address 0x4 - core index']
  #allocation1 [shape = 'u32[144,128]{1,0:T(1,128)}', space=vmem, size = 0x12000, scoped, tag = 'internal scratch']
  %s0 = inlined_call_operand.vmem [shape: bf16[2,4,512], index: 0, kind: input, shape index: {}]
  %s1 = inlined_call_operand.vmem [shape: bf16[8,36], index: 1, kind: input, shape index: {}]
  %s2 = inlined_call_operand.vmem [shape: f32[1,384], index: 2, kind: input, shape index: {}]
  %s3 = inlined_call_operand.vmem [shape: bf16[2,8,384], index: 3, kind: output, shape index: {0}]
  %s4 = inlined_call_operand.vmem [shape: f32[2,8,2], index: 4, kind: output, shape index: {1}]
  %5 = xla_tuple %s3, %s4
  %s6 = sld [smem:[#allocation0]]
  $region53: #{relu_conv_bn.1} parent=0
    _
  %s8 = ssub.s32 1, %s6
  %s9 = scalar_select 0, %s8, %s6
  loop: start=0, step=1, limit=4
  $region2: #{relu_conv_bn.1} parent=0 // loop_pre_header
    _
  $region3: #{relu_conv_bn.1} parent=0 // loop_header
    %s11 = sphi 0, %s15
    %p12 = scmp.ge.s32.totalorder %s11, 4
    %s21 = sphi 0, %s23
    %s24 = sphi 0, %s21
    %s25 = sphi 0, %s24
    %s41 = sphi 0, %s25
    %s45 = sphi 0, %s45
    %s47 = sphi 0, %s45
    %s48 = sphi 0, %s47
    %s62 = sphi 0, %s48
    %s66 = sphi 0, %s66
    %s68 = sphi 0, %s66
    %s69 = sphi 0, %s68
    %s83 = sphi 0, %s69
    %s89 = sphi 0, %s91
    %s92 = sphi 0, %s89
    %s93 = sphi 0, %s92
    %s109 = sphi 0, %s93
    %s115 = sphi 0, %s117
    %s118 = sphi 0, %s115
    %s119 = sphi 0, %s118
    %s135 = sphi 0, %s119
  $region4: #{relu_conv_bn.1} parent=0 // loop_header_branch
    %14 = sbr.rel (%p12) target = $region8
  $region5: #{relu_conv_bn.1} parent=0 // loop_body
    %s16 = ssub.s32 %s11, 1
    %s17 = ssub.s32 %s11, 2
    %s18 = sadd.s32 %s11, 1
    %s19 = ssub.s32 %s11, %s18
    %p20 = scmp.eq.s32.totalorder %s19, 0
    %s22 = sadd.s32 %s21, 1
    %s23 = scalar_select %p20, %s21, %s22
    %p26 = pneg %p20
    %p27 = scmp.eq.s32.totalorder %s11, 1
    %p28 = por %p26, %p27
    %p29 = scmp.ne.s32.totalorder %s21, %s24
    %p30 = scmp.eq.s32.totalorder %s11, 0
    %p31 = por %p29, %p30
    %p32 = scmp.ne.s32.totalorder %s21, %s24
    %p33 = scmp.eq.s32.totalorder %s16, 1
    %p34 = por %p32, %p33
    %p35 = scmp.ne.s32.totalorder %s24, %s25
    %p36 = scmp.eq.s32.totalorder %s16, 0
    %p37 = por %p35, %p36
    %p38 = scmp.ne.s32.totalorder %s24, %s25
    %p39 = scmp.eq.s32.totalorder %s17, 1
    %p40 = por %p38, %p39
    %p42 = scmp.ne.s32.totalorder %s25, %s41
    %p43 = scmp.eq.s32.totalorder %s17, 0
    %p44 = por %p42, %p43
    %s46 = sadd.s32 %s45, 1
    %p49 = scmp.eq.s32.totalorder %s11, 1
    %p50 = scmp.ne.s32.totalorder %s45, %s47
    %p51 = scmp.eq.s32.totalorder %s11, 0
    %p52 = por %p50, %p51
    %p53 = scmp.ne.s32.totalorder %s45, %s47
    %p54 = scmp.eq.s32.totalorder %s16, 1
    %p55 = por %p53, %p54
    %p56 = scmp.ne.s32.totalorder %s47, %s48
    %p57 = scmp.eq.s32.totalorder %s16, 0
    %p58 = por %p56, %p57
    %p59 = scmp.ne.s32.totalorder %s47, %s48
    %p60 = scmp.eq.s32.totalorder %s17, 1
    %p61 = por %p59, %p60
    %p63 = scmp.ne.s32.totalorder %s48, %s62
    %p64 = scmp.eq.s32.totalorder %s17, 0
    %p65 = por %p63, %p64
    %s67 = sadd.s32 %s66, 1
    %p70 = scmp.eq.s32.totalorder %s11, 1
    %p71 = scmp.ne.s32.totalorder %s66, %s68
    %p72 = scmp.eq.s32.totalorder %s11, 0
    %p73 = por %p71, %p72
    %p74 = scmp.ne.s32.totalorder %s66, %s68
    %p75 = scmp.eq.s32.totalorder %s16, 1
    %p76 = por %p74, %p75
    %p77 = scmp.ne.s32.totalorder %s68, %s69
    %p78 = scmp.eq.s32.totalorder %s16, 0
    %p79 = por %p77, %p78
    %p80 = scmp.ne.s32.totalorder %s68, %s69
    %p81 = scmp.eq.s32.totalorder %s17, 1
    %p82 = por %p80, %p81
    %p84 = scmp.ne.s32.totalorder %s69, %s83
    %p85 = scmp.eq.s32.totalorder %s17, 0
    %p86 = por %p84, %p85
    %s87 = ssub.s32 %s11, %s18
    %p88 = scmp.eq.s32.totalorder %s87, 0
    %s90 = sadd.s32 %s89, 1
    %s91 = scalar_select %p88, %s89, %s90
    %p94 = pneg %p88
    %p95 = scmp.eq.s32.totalorder %s11, 1
    %p96 = por %p94, %p95
    %p97 = scmp.ne.s32.totalorder %s89, %s92
    %p98 = scmp.eq.s32.totalorder %s11, 0
    %p99 = por %p97, %p98
    %p100 = scmp.ne.s32.totalorder %s89, %s92
    %p101 = scmp.eq.s32.totalorder %s16, 1
    %p102 = por %p100, %p101
    %p103 = scmp.ne.s32.totalorder %s92, %s93
    %p104 = scmp.eq.s32.totalorder %s16, 0
    %p105 = por %p103, %p104
    %p106 = scmp.ne.s32.totalorder %s92, %s93
    %p107 = scmp.eq.s32.totalorder %s17, 1
    %p108 = por %p106, %p107
    %p110 = scmp.ne.s32.totalorder %s93, %s109
    %p111 = scmp.eq.s32.totalorder %s17, 0
    %p112 = por %p110, %p111
    %s113 = ssub.s32 %s11, %s18
    %p114 = scmp.eq.s32.totalorder %s113, 0
    %s116 = sadd.s32 %s115, 1
    %s117 = scalar_select %p114, %s115, %s116
    %p120 = pneg %p114
    %p121 = scmp.eq.s32.totalorder %s11, 1
    %p122 = por %p120, %p121
    %p123 = scmp.ne.s32.totalorder %s115, %s118
    %p124 = scmp.eq.s32.totalorder %s11, 0
    %p125 = por %p123, %p124
    %p126 = scmp.ne.s32.totalorder %s115, %s118
    %p127 = scmp.eq.s32.totalorder %s16, 1
    %p128 = por %p126, %p127
    %p129 = scmp.ne.s32.totalorder %s118, %s119
    %p130 = scmp.eq.s32.totalorder %s16, 0
    %p131 = por %p129, %p130
    %p132 = scmp.ne.s32.totalorder %s118, %s119
    %p133 = scmp.eq.s32.totalorder %s17, 1
    %p134 = por %p132, %p133
    %p136 = scmp.ne.s32.totalorder %s119, %s135
    %p137 = scmp.eq.s32.totalorder %s17, 0
    %p138 = por %p136, %p137
    %p139 = scmp.le.s32.totalorder 1, %s11
    %p140 = scmp.lt.s32.totalorder %s11, 3
    %p141 = pnand %p139, %p140
    %p142 = pneg %p141
    // Predicated region
    $region9: #{relu_conv_bn.1} parent=5 // pred_check
      _
    $region10: #{relu_conv_bn.1} parent=5 // pred_check_branch
      %144 = sbr.rel (%p141) target = $region12
    $region11: #{relu_conv_bn.1} parent=5 // pred_region
      %s145 = ssub.s32 %s11, 1
      // Predicated region
      $region13: #{relu_conv_bn.1} parent=11 // pred_check
        %p146 = pneg %p58
      $region14: #{relu_conv_bn.1} parent=11 // pred_check_branch
        %148 = sbr.rel (%p146) target = $region16
      $region15: #{relu_conv_bn.1} parent=11 // pred_region
        _
      $region16: #{relu_conv_bn.1} parent=11 // pred_fallthru
        _
      // Predicated region
      $region17: #{relu_conv_bn.1} parent=11 // pred_check
        %p149 = pneg %p79
      $region18: #{relu_conv_bn.1} parent=11 // pred_check_branch
        %151 = sbr.rel (%p149) target = $region20
      $region19: #{relu_conv_bn.1} parent=11 // pred_region
        _
      $region20: #{relu_conv_bn.1} parent=11 // pred_fallthru
        _
    $region12: #{relu_conv_bn.1} parent=5 // pred_fallthru
      _
    %p152 = scmp.lt.s32.totalorder %s11, 2
    // Predicated region
    $region21: #{relu_conv_bn.1} parent=5 // pred_check
      %p153 = pneg %p152
    $region22: #{relu_conv_bn.1} parent=5 // pred_check_branch
      %155 = sbr.rel (%p153) target = $region24
    $region23: #{relu_conv_bn.1} parent=5 // pred_region
      // Predicated region
      $region25: #{relu_conv_bn.1} parent=23 // pred_check
        %p156 = pneg %p31
      $region26: #{relu_conv_bn.1} parent=23 // pred_check_branch
        %158 = sbr.rel (%p156) target = $region28
      $region27: #{relu_conv_bn.1} parent=23 // pred_region
        %p159 = scmp.lt.s32.totalorder %s11, 1
        %s160 = scalar_select %p159, %s11, 1
        %s161 = smul.addr %s160, 4
        %s162 = smul.addr %s161, 2
        %s163 = scalar_lea.vmem %s0, %s162
      $region28: #{relu_conv_bn.1} parent=23 // pred_fallthru
        _
    $region24: #{relu_conv_bn.1} parent=5 // pred_fallthru
      _
    %p164 = scmp.le.s32.totalorder 1, %s11
    %p165 = scmp.lt.s32.totalorder %s11, 3
    %p166 = pnand %p164, %p165
    %p167 = pneg %p166
    // Predicated region
    $region29: #{relu_conv_bn.1} parent=5 // pred_check
      _
    $region30: #{relu_conv_bn.1} parent=5 // pred_check_branch
      %169 = sbr.rel (%p166) target = $region32
    $region31: #{relu_conv_bn.1} parent=5 // pred_region
      %s170 = ssub.s32 %s11, 1
      %p171 = scmp.lt.s32.totalorder %s16, 1
      %s172 = scalar_select %p171, %s16, 1
      %s173 = smul.addr %s172, 4
      %s174 = smul.addr %s173, 2
      %s175 = scalar_lea.vmem %s0, %s174
      %p176 = pneg %p37
      %p177 = pneg %p34
      %p178 = pneg %p58
      %p179 = pneg %p55
      %p180 = pneg %p79
      %p181 = pneg %p76
      %p182 = pneg %p105
      %p183 = pneg %p102
      %p184 = scmp.lt.s32.totalorder %s16, 1
      %s185 = scalar_select %p184, %s16, 1
      %s186 = smul.addr %s185, 3
      %s187 = smul.addr %s186, 4
      %s188 = scalar_lea.vmem %s3, %s187
      %p189 = pneg %p131
      %p190 = pneg %p128
      %p191 = scmp.lt.s32.totalorder %s16, 1
      %s192 = scalar_select %p191, %s16, 1
      %s193 = smul.addr %s192, 8
      %s194 = scalar_lea.vmem %s4, %s193
      %p195 = scmp.lt.s32.totalorder %s16, 1
      %s196 = scalar_select %p195, %s16, 1
      %s197 = smul.addr %s196, 4
      %s198 = smul.addr %s197, 2
      %s199 = scalar_lea.vmem %s0, %s198
      %p200 = scmp.lt.s32.totalorder %s16, 1
      %s201 = scalar_select %p200, %s16, 1
      %s202 = smul.addr %s201, 3
      %s203 = smul.addr %s202, 4
      %s204 = scalar_lea.vmem %s3, %s203
      %p205 = scmp.lt.s32.totalorder %s16, 1
      %s206 = scalar_select %p205, %s16, 1
      %s207 = smul.addr %s206, 8
      %s208 = scalar_lea.vmem %s4, %s207
      %v210 = vld [vmem:[%s199] sm:$0xff]
      %v211 = vmax.bf16 %v210, 0
      %v213 = vcombine.high %v211, %v211
      %v215 = vunpack.c.l.s4 1983009808
      %v216 = vunpack.c.0.s8 %v215
      %v217 = vlaneseq
      %v218 = vshrl.u32 %v217, 7
      %v219 = vsub.s32 %v216, %v218
      %v220 = vrot.slane %v211, %v219
      %v222 = vunpack.c.l.s4 1983009808
      %v223 = vunpack.c.0.s8 %v222
      %v224 = vlaneseq
      %v225 = vshrl.u32 %v224, 7
      %v226 = vsub.s32 %v223, %v225
      %v227 = vrot.slane %v213, %v226
      %v228 = vcombine.high %v220, %v220
      %v229 = vcombine.low %v211, %v211
      %v231 = vunpack.c.l.s4 1983009808
      %v232 = vunpack.c.0.s8 %v231
      %v233 = vlaneseq
      %v234 = vshrl.u32 %v233, 7
      %v235 = vsub.s32 %v232, %v234
      %v236 = vrot.slane %v229, %v235
      %v237 = vcombine.high %v236, %v236
      %238 = vrot.lane.b32.xlu0 %v236, 127
      %v239 = vpop.permute.xlu0 %238
      %240 = vrot.lane.b32.xlu0 %v237, 127
      %v241 = vpop.permute.xlu0 %240
      %242 = vrot.lane.b32.xlu0 %v220, 127
      %v243 = vpop.permute.xlu0 %242
      %244 = vrot.lane.b32.xlu0 %v228, 127
      %v245 = vpop.permute.xlu0 %244
      %vm246 = vcmask 1039360
      %v247 = vsel %vm246, %v239, %v241
      %v248 = vsel %vm246, %v241, %v243
      %v249 = vsel %vm246, %v243, %v245
      %v250 = vcombine.low %v220, %v220
      %v251 = vcombine.low %v227, %v227
      %252 = vrot.lane.b32.xlu0 %v250, 126
      %v253 = vpop.permute.xlu0 %252
      %254 = vrot.lane.b32.xlu0 %v220, 126
      %v255 = vpop.permute.xlu0 %254
      %256 = vrot.lane.b32.xlu0 %v251, 126
      %v257 = vpop.permute.xlu0 %256
      %258 = vrot.lane.b32.xlu0 %v227, 126
      %v259 = vpop.permute.xlu0 %258
      %vm260 = vcmask 1031168
      %v261 = vsel %vm260, %v253, %v255
      %v262 = vsel %vm260, %v255, %v257
      %v263 = vsel %vm260, %v257, %v259
      %v264 = vcombine.low %v236, %v236
      %265 = vrot.lane.b32.xlu0 %v264, 110
      %v266 = vpop.permute.xlu0 %265
      %267 = vrot.lane.b32.xlu0 %v236, 110
      %v268 = vpop.permute.xlu0 %267
      %269 = vrot.lane.b32.xlu0 %v250, 110
      %v270 = vpop.permute.xlu0 %269
      %271 = vrot.lane.b32.xlu0 %v220, 110
      %v272 = vpop.permute.xlu0 %271
      %vm273 = vcmask 900096
      %v274 = vsel %vm273, %v266, %v268
      %v275 = vsel %vm273, %v268, %v270
      %v276 = vsel %vm273, %v270, %v272
      %v277 = vcombine.high %v227, %v227
      %278 = vrot.lane.b32.xlu0 %v220, 109
      %v279 = vpop.permute.xlu0 %278
      %280 = vrot.lane.b32.xlu0 %v228, 109
      %v281 = vpop.permute.xlu0 %280
      %282 = vrot.lane.b32.xlu0 %v227, 109
      %v283 = vpop.permute.xlu0 %282
      %284 = vrot.lane.b32.xlu0 %v277, 109
      %v285 = vpop.permute.xlu0 %284
      %vm286 = vcmask 891904
      %v287 = vsel %vm286, %v279, %v281
      %v288 = vsel %vm286, %v281, %v283
      %v289 = vsel %vm286, %v283, %v285
      %290 = vrot.lane.b32.xlu0 %v236, 108
      %v291 = vpop.permute.xlu0 %290
      %292 = vrot.lane.b32.xlu0 %v237, 108
      %v293 = vpop.permute.xlu0 %292
      %294 = vrot.lane.b32.xlu0 %v220, 108
      %v295 = vpop.permute.xlu0 %294
      %296 = vrot.lane.b32.xlu0 %v228, 108
      %v297 = vpop.permute.xlu0 %296
      %vm298 = vcmask 883712
      %v299 = vsel %vm298, %v291, %v293
      %v300 = vsel %vm298, %v293, %v295
      %v301 = vsel %vm298, %v295, %v297
      %302 = vrot.lane.b32.xlu0 %v250, 92
      %v303 = vpop.permute.xlu0 %302
      %304 = vrot.lane.b32.xlu0 %v220, 92
      %v305 = vpop.permute.xlu0 %304
      %306 = vrot.lane.b32.xlu0 %v251, 92
      %v307 = vpop.permute.xlu0 %306
      %308 = vrot.lane.b32.xlu0 %v227, 92
      %v309 = vpop.permute.xlu0 %308
      %vm310 = vcmask 752640
      %v311 = vsel %vm310, %v303, %v305
      %v312 = vsel %vm310, %v305, %v307
      %v313 = vsel %vm310, %v307, %v309
      %314 = vrot.lane.b32.xlu0 %v264, 91
      %v315 = vpop.permute.xlu0 %314
      %316 = vrot.lane.b32.xlu0 %v236, 91
      %v317 = vpop.permute.xlu0 %316
      %318 = vrot.lane.b32.xlu0 %v250, 91
      %v319 = vpop.permute.xlu0 %318
      %320 = vrot.lane.b32.xlu0 %v220, 91
      %v321 = vpop.permute.xlu0 %320
      %vm322 = vcmask 744448
      %v323 = vsel %vm322, %v315, %v317
      %v324 = vsel %vm322, %v317, %v319
      %v325 = vsel %vm322, %v319, %v321
      %326 = vrot.lane.b32.xlu0 %v220, 90
      %v327 = vpop.permute.xlu0 %326
      %328 = vrot.lane.b32.xlu0 %v228, 90
      %v329 = vpop.permute.xlu0 %328
      %330 = vrot.lane.b32.xlu0 %v227, 90
      %v331 = vpop.permute.xlu0 %330
      %332 = vrot.lane.b32.xlu0 %v277, 90
      %v333 = vpop.permute.xlu0 %332
      %vm334 = vcmask 736256
      %v335 = vsel %vm334, %v327, %v329
      %v336 = vsel %vm334, %v329, %v331
      %v337 = vsel %vm334, %v331, %v333
      %vm338 = vcmask 1041408
      %v341 = vsel %vm338, %v220, %v247
      %v344 = vsel %vm338, %v228, %v248
      %v347 = vsel %vm338, %v227, %v249
      %vm348 = vcmask 1043456
      %v350 = vsel %vm348, %v341, %v261
      %v352 = vsel %vm348, %v344, %v262
      %v354 = vsel %vm348, %v347, %v263
      %vm355 = vcmask 1045504
      %v357 = vsel %vm355, %v350, %v274
      %v360 = vsel %vm355, %v352, %v275
      %v363 = vsel %vm355, %v354, %v276
      %v367 = vsel %vm338, %v287, %v299
      %v370 = vsel %vm338, %v288, %v300
      %v373 = vsel %vm338, %v289, %v301
      %v375 = vsel %vm348, %v367, %v311
      %v377 = vsel %vm348, %v370, %v312
      %v379 = vsel %vm348, %v373, %v313
      %v381 = vsel %vm355, %v375, %v323
      %v384 = vsel %vm355, %v377, %v324
      %v387 = vsel %vm355, %v379, %v325
      %v389 = vld [vmem:[%s1] sm:$0xf]
      %vm390 = vcmask 293888
      %v392 = vsel %vm390, %v389, 0
      %v395 = vsel %vm338, %v335, 0
      %v398 = vsel %vm338, %v336, 0
      %v401 = vsel %vm338, %v337, 0
      %403 = vmatprep.subr.bf16.mxu0 0
      %404 = vmatpush1.bf16.msra.mxu0 0
      %405 = vmatprep.subr.bf16.mxu0 0
      %406 = vmatpush1.bf16.msra.mxu0 0
      %407 = vmatprep.subr.bf16.mxu0 0
      %408 = vmatpush1.bf16.msra.mxu0 0
      %409 = vmatprep.subr.bf16.mxu0 0
      %410 = vmatpush1.bf16.msra.mxu0 0
      %411 = vmatprep.subr.bf16.mxu0 0
      %412 = vmatpush1.bf16.msra.mxu0 0
      %413 = vmatprep.subr.bf16.mxu0 %v398
      %414 = vmatpush1.bf16.msra.mxu0 %v395
      %415 = vmatprep.subr.bf16.mxu0 %v384
      %416 = vmatpush1.bf16.msra.mxu0 %v381
      %417 = vmatprep.subr.bf16.mxu0 %v360
      %418 = vmatpush1.bf16.msra.mxu0 %v357
      %419 = vmatprep.subr.bf16.mxu0 0
      %420 = vmatpush2.bf16.msra.mxu0 0
      %421 = vmatprep.subr.bf16.mxu0 0
      %422 = vmatpush2.bf16.msra.mxu0 0
      %423 = vmatprep.subr.bf16.mxu0 0
      %424 = vmatpush2.bf16.msra.mxu0 0
      %425 = vmatprep.subr.bf16.mxu0 0
      %426 = vmatpush2.bf16.msra.mxu0 0
      %427 = vmatprep.subr.bf16.mxu0 0
      %428 = vmatpush2.bf16.msra.mxu0 0
      %429 = vmatprep.subr.bf16.mxu0 0
      %430 = vmatpush2.bf16.msra.mxu0 0
      %431 = vmatprep.subr.bf16.mxu0 0
      %432 = vmatpush2.bf16.msra.mxu0 0
      %433 = vmatprep.subr.bf16.mxu0 0
      %434 = vmatpush2.bf16.msra.mxu0 0
      %435 = vmatprep.mubr.bf16.mxu0 0
      %436 = vmatmul.mubr.bf16.gmra.mxu0 %v392
      %v437 = vpop.f32.mrf.mxu0
      %v438 = vadd.f32 0.0, %v437
      %v439 = vpop.f32.mrf.mxu0
      %v440 = vadd.f32 0.0, %v439
      %v441 = vpop.f32.mrf.mxu0
      %v442 = vpop.f32.mrf.mxu0
      %443 = vdwg.mxu0
      %444 = vmatprep.subr.bf16.mxu0 0
      %445 = vmatpush1.bf16.msra.mxu0 0
      %446 = vmatprep.subr.bf16.mxu0 0
      %447 = vmatpush1.bf16.msra.mxu0 0
      %448 = vmatprep.subr.bf16.mxu0 0
      %449 = vmatpush1.bf16.msra.mxu0 0
      %450 = vmatprep.subr.bf16.mxu0 0
      %451 = vmatpush1.bf16.msra.mxu0 0
      %452 = vmatprep.subr.bf16.mxu0 0
      %453 = vmatpush1.bf16.msra.mxu0 0
      %454 = vmatprep.subr.bf16.mxu0 0
      %455 = vmatpush1.bf16.msra.mxu0 %v401
      %456 = vmatprep.subr.bf16.mxu0 0
      %457 = vmatpush1.bf16.msra.mxu0 %v387
      %458 = vmatprep.subr.bf16.mxu0 0
      %459 = vmatpush1.bf16.msra.mxu0 %v363
      %460 = vmatprep.subr.bf16.mxu0 0
      %461 = vmatpush2.bf16.msra.mxu0 0
      %462 = vmatprep.subr.bf16.mxu0 0
      %463 = vmatpush2.bf16.msra.mxu0 0
      %464 = vmatprep.subr.bf16.mxu0 0
      %465 = vmatpush2.bf16.msra.mxu0 0
      %466 = vmatprep.subr.bf16.mxu0 0
      %467 = vmatpush2.bf16.msra.mxu0 0
      %468 = vmatprep.subr.bf16.mxu0 0
      %469 = vmatpush2.bf16.msra.mxu0 0
      %470 = vmatprep.subr.bf16.mxu0 0
      %471 = vmatpush2.bf16.msra.mxu0 0
      %472 = vmatprep.subr.bf16.mxu0 0
      %473 = vmatpush2.bf16.msra.mxu0 0
      %474 = vmatprep.subr.bf16.mxu0 0
      %475 = vmatpush2.bf16.msra.mxu0 0
      %476 = vmatprep.mubr.bf16.mxu0 0
      %477 = vmatmul.mubr.bf16.gmra.mxu0 %v392
      %v478 = vpop.f32.mrf.mxu0
      %v479 = vadd.f32 0.0, %v478
      %v480 = vpop.f32.mrf.mxu0
      %v481 = vpop.f32.mrf.mxu0
      %v482 = vpop.f32.mrf.mxu0
      %483 = vdwg.mxu0
      %v484 = vpack.c.bf16 %v438, %v438
      %v485 = vpack.c.bf16 %v440, %v440
      %v486 = vpack.c.bf16 %v479, %v479
      %v490 = vunpack.c.l.b16 %v484
      %v491 = vunpack.c.l.b16 %v485
      %v492 = vunpack.c.l.b16 %v486
      %v493 = vpack.c.b16 %v491, %v490
      %v494 = vpack.c.b16 %v492, %v492
      %497 = vst [vmem:[%s204] sm:$0xff] %v493
      %498 = vst [vmem:[%s204 + $0x8] sm:$0xf] %v494
      %v499 = vld [vmem:[%s2] sm:$0x7]
      %v501 = vlaneseq
      %v502 = vshrl.u32 %v501, 7
      %v503 = vsub.s32 0, %v502
      %v504 = vrot.slane %v499, %v503
      %v505 = vlaneseq
      %v506 = vshrl.u32 %v505, 7
      %v507 = vsub.s32 1, %v506
      %v508 = vrot.slane %v499, %v507
      %v509 = vlaneseq
      %v510 = vshrl.u32 %v509, 7
      %v511 = vsub.s32 2, %v510
      %v512 = vrot.slane %v499, %v511
      %v516 = vmul.f32 %v438, %v504
      %v517 = vmul.f32 %v440, %v508
      %v518 = vmul.f32 %v479, %v512
      %v519 = vadd.f32 %v516, %v517
      %v520 = vadd.f32 %v519, %v518
      %521 = vadd.xlane.f32.xlu0 %v520
      %v522 = vpop.xlane.xlu0 %521
      %vm523 = vcmask 7168
      %524 = vst.msk [vmem:[%s208] sm:$0xff] %vm523, %v522
      %v525 = vmul.f32 %v516, %v438
      %v526 = vmul.f32 %v517, %v440
      %v527 = vmul.f32 %v518, %v479
      %v528 = vadd.f32 %v525, %v526
      %v529 = vadd.f32 %v528, %v527
      %530 = vadd.xlane.f32.xlu0 %v529
      %v531 = vpop.xlane.xlu0 %530
      %vm532 = vcmask 15368
      %533 = vst.msk [vmem:[%s208] sm:$0xff] %vm532, %v531
      %p534 = scmp.lt.s32.totalorder %s16, 1
      %s535 = scalar_select %p534, %s16, 1
      %s536 = smul.addr %s535, 3
      %s537 = smul.addr %s536, 4
      %s538 = scalar_lea.vmem %s3, %s537
      %p539 = scmp.lt.s32.totalorder %s16, 1
      %s540 = scalar_select %p539, %s16, 1
      %s541 = smul.addr %s540, 8
      %s542 = scalar_lea.vmem %s4, %s541
      // Predicated region
      $region33: #{relu_conv_bn.1} parent=31 // pred_check
        %p543 = pneg %p102
      $region34: #{relu_conv_bn.1} parent=31 // pred_check_branch
        %545 = sbr.rel (%p543) target = $region36
      $region35: #{relu_conv_bn.1} parent=31 // pred_region
        _
      $region36: #{relu_conv_bn.1} parent=31 // pred_fallthru
        _
      // Predicated region
      $region37: #{relu_conv_bn.1} parent=31 // pred_check
        %p546 = pneg %p128
      $region38: #{relu_conv_bn.1} parent=31 // pred_check_branch
        %548 = sbr.rel (%p546) target = $region40
      $region39: #{relu_conv_bn.1} parent=31 // pred_region
        _
      $region40: #{relu_conv_bn.1} parent=31 // pred_fallthru
        _
    $region32: #{relu_conv_bn.1} parent=5 // pred_fallthru
      _
    %p549 = scmp.le.s32.totalorder 2, %s11
    // Predicated region
    $region41: #{relu_conv_bn.1} parent=5 // pred_check
      %p550 = pneg %p549
    $region42: #{relu_conv_bn.1} parent=5 // pred_check_branch
      %552 = sbr.rel (%p550) target = $region44
    $region43: #{relu_conv_bn.1} parent=5 // pred_region
      %s553 = ssub.s32 %s11, 2
      // Predicated region
      $region45: #{relu_conv_bn.1} parent=43 // pred_check
        %p554 = pneg %p108
      $region46: #{relu_conv_bn.1} parent=43 // pred_check_branch
        %556 = sbr.rel (%p554) target = $region48
      $region47: #{relu_conv_bn.1} parent=43 // pred_region
        %p557 = scmp.lt.s32.totalorder %s17, 1
        %s558 = scalar_select %p557, %s17, 1
        %s559 = smul.addr %s558, 3
        %s560 = smul.addr %s559, 4
        %s561 = scalar_lea.vmem %s3, %s560
      $region48: #{relu_conv_bn.1} parent=43 // pred_fallthru
        _
      // Predicated region
      $region49: #{relu_conv_bn.1} parent=43 // pred_check
        %p562 = pneg %p134
      $region50: #{relu_conv_bn.1} parent=43 // pred_check_branch
        %564 = sbr.rel (%p562) target = $region52
      $region51: #{relu_conv_bn.1} parent=43 // pred_region
        %p565 = scmp.lt.s32.totalorder %s17, 1
        %s566 = scalar_select %p565, %s17, 1
        %s567 = smul.addr %s566, 8
        %s568 = scalar_lea.vmem %s4, %s567
      $region52: #{relu_conv_bn.1} parent=43 // pred_fallthru
        _
    $region44: #{relu_conv_bn.1} parent=5 // pred_fallthru
      _
  $region6: #{relu_conv_bn.1} parent=0 // loop_footer
    %s15 = sadd.s32 1, %s11
  $region7: #{relu_conv_bn.1} parent=0 // loop_footer_branch
    %10 = sbr.rel target = $region3
  $region8: #{relu_conv_bn.1} parent=0 // loop_exit
    _

</llo_original>
